<compile_context>
chip_gen: v6e
topology: v6e:2x2x1
jax: 0.10.0
libtpu: 0.0.40
codegen_flags: <defaults>
</compile_context>

<pallas_src>
import functools

import jax
import jax.numpy as jnp
from jax import lax
from jax.experimental import pallas as pl
from jax.experimental.pallas import tpu as pltpu

BN_EPS = 1e-5


def _vmem_limit_bytes():
    """Generation-aware scoped-VMEM limit: ~92 MiB on 128-MiB parts (v5e/v6e),
    ~46 MiB on 64-MiB parts (v7x)."""
    cap = 128 * 1024 * 1024
    try:
        info = pltpu.get_tpu_info()
        cap = int(getattr(info, "vmem_capacity_bytes", cap))
    except Exception:
        pass
    return max(16 * 1024 * 1024, min(int(cap * 0.72), 100 * 1024 * 1024))


def _pick_spatial_tile(hw, c, vmem_limit, elem_bytes):
    """Largest lane-dense spatial tile T (multiple of 128 dividing H*W) whose
    pass-2 working set (x/skip double-buffered + out double-buffered + f32 y
    temp + both double-buffered (C,C) f32 weight blocks) stays under ~70% of
    the scoped VMEM limit."""
    weight_bytes = 2 * 2 * c * c * 4                       # W_x, W_skip, 2 buffers
    budget = int(0.7 * vmem_limit) - weight_bytes
    per_col = c * (2 * 2 * elem_bytes + 2 * elem_bytes + 4)  # = 28*C bytes for f32
    cap = max(128, (budget // max(per_col, 1)) // 128 * 128)
    if hw <= cap:
        return hw                                          # single full tile
    t = min(cap, (hw // 128) * 128)
    while t >= 128:
        if hw % t == 0:
            return t
        t -= 128
    # TODO(synk): masked remainder-tile path for H*W with no multiple-of-128 divisor.
    return hw


def _conv_1x1(wx, ws, x, s, small_c):
    """y = W_x @ x + W_skip @ skip, f32 accumulation.
    MXU dot for reasonable C; unrolled VPU broadcast-MAC for tiny C."""
    if small_c:
        c = wx.shape[0]
        xf = x.astype(jnp.float32)
        sf = s.astype(jnp.float32)
        y = jnp.zeros((c, x.shape[-1]), jnp.float32)
        for j in range(c):
            y = y + wx[:, j:j + 1] * xf[j:j + 1, :]
            y = y + ws[:, j:j + 1] * sf[j:j + 1, :]
        return y
    return (jnp.dot(wx, x, preferred_element_type=jnp.float32)
            + jnp.dot(ws, s, preferred_element_type=jnp.float32))


def _fold_columns(y, lane):
    """Reduce (C, T) -> (C, lane) with lane-aligned VPU adds (T % lane == 0).
    O(log(T/lane)) traced ops; keeps the per-tile reduction off the XLU."""
    w = y.shape[-1]
    extras = []
    while w > lane:
        if (w // lane) % 2 == 1:
            extras.append(y[:, w - lane:])
            w -= lane
            y = y[:, :w]
        else:
            half = w // 2
            y = y[:, :half] + y[:, half:]
            w = half
    for e in extras:
        y = y + e
    return y


def _stats_kernel(x_ref, s_ref, wx_ref, ws_ref, sum_ref, sq_ref,
                  acc_sum, acc_sq, *, small_c, stat_lanes):
    """Pass 1: partial per-channel sum / sum-of-squares of y = conv1x1(x, skip),
    accumulated over the inner spatial axis into a (C, stat_lanes) VMEM scratch;
    single cross-lane reduce + store only on the last inner step."""
    si = pl.program_id(2)

    @pl.when(si == 0)
    def _():
        acc_sum[...] = jnp.zeros_like(acc_sum)
        acc_sq[...] = jnp.zeros_like(acc_sq)

    y = _conv_1x1(wx_ref[...], ws_ref[...], x_ref[0], s_ref[0], small_c)

    if stat_lanes > 1:
        acc_sum[...] += _fold_columns(y, stat_lanes)
        acc_sq[...] += _fold_columns(y * y, stat_lanes)
    else:
        acc_sum[...] += jnp.sum(y, axis=1, keepdims=True)
        acc_sq[...] += jnp.sum(y * y, axis=1, keepdims=True)

    @pl.when(si == pl.num_programs(2) - 1)
    def _():
        sum_ref[...] = jnp.sum(acc_sum[...], axis=1, keepdims=True)[None, None]
        sq_ref[...] = jnp.sum(acc_sq[...], axis=1, keepdims=True)[None, None]


def _norm_kernel(x_ref, s_ref, wx_ref, ws_ref, scale_ref, shift_ref, o_ref, *,
                 small_c):
    """Pass 2: recompute the 1x1 conv for this tile and apply the pre-folded
    per-channel scale/shift (conv bias cancels under training-mode BN)."""
    y = _conv_1x1(wx_ref[...], ws_ref[...], x_ref[0], s_ref[0], small_c)
    o_ref[...] = ((y * scale_ref[...] + shift_ref[...]).astype(o_ref.dtype))[None]


def enhanced_skip_block(x, skip, conv_w, conv_b, bn_gamma, bn_beta, eps=BN_EPS):
    """x, skip: (N, C, H, W). conv_w: (C, 2C, 1, 1), conv_b: (C,).
    Returns (N, C, H, W), matching EnhancedSkipBlock.forward (training-mode BN).
    conv_b is accepted for API parity but unused: it cancels exactly under
    BatchNorm's mean subtraction (eval-mode / running-stats would need it)."""
    del conv_b
    N, C, H, W = x.shape
    HW = H * W

    vmem_limit = _vmem_limit_bytes()
    elem_bytes = jnp.dtype(x.dtype).itemsize
    T = _pick_spatial_tile(HW, C, vmem_limit, elem_bytes)
    S = HW // T
    # Split the spatial tiles of pass 1 so both v7x TensorCores have parallel
    # work even when N == 1 (neutral on single-TC v5e/v6e).
    s_outer = 2 if (S >= 2 and S % 2 == 0) else 1
    s_inner = S // s_outer

    small_c = C < (16 if x.dtype == jnp.bfloat16 else 8)
    stat_lanes = 128 if (T >= 128 and T % 128 == 0) else 1

    x3 = x.reshape(N, C, HW)
    s3 = skip.reshape(N, C, HW)
    w = conv_w.reshape(C, 2 * C).astype(jnp.float32)
    wx = w[:, :C]                                  # weights for x channels
    ws = w[:, C:]                                  # weights for skip channels

    flops = 4 * C * C * N * HW                     # 2C-in * C-out MACs * 2

    # ---- Pass 1: partial per-channel statistics --------------------------
    act_spec1 = pl.BlockSpec((1, C, T), lambda n, so, si: (n, 0, so * s_inner + si))
    w_spec1 = pl.BlockSpec((C, C), lambda n, so, si: (0, 0))
    stat_spec1 = pl.BlockSpec((1, 1, C, 1), lambda n, so, si: (n, so, 0, 0))

    part_sum, part_sq = pl.pallas_call(
        functools.partial(_stats_kernel, small_c=small_c, stat_lanes=stat_lanes),
        out_shape=(jax.ShapeDtypeStruct((N, s_outer, C, 1), jnp.float32),
                   jax.ShapeDtypeStruct((N, s_outer, C, 1), jnp.float32)),
        grid=(N, s_outer, s_inner),
        in_specs=[act_spec1, act_spec1, w_spec1, w_spec1],
        out_specs=(stat_spec1, stat_spec1),
        scratch_shapes=[pltpu.VMEM((C, stat_lanes), jnp.float32),
                        pltpu.VMEM((C, stat_lanes), jnp.float32)],
        compiler_params=pltpu.CompilerParams(
            dimension_semantics=("parallel", "parallel", "arbitrary"),
            vmem_limit_bytes=vmem_limit),
        cost_estimate=pl.CostEstimate(
            flops=flops, transcendentals=0,
            bytes_accessed=2 * N * C * HW * elem_bytes),
    )(x3, s3, wx, ws)

    # ---- Tiny cross-(batch, spatial-chunk) combine + BN fold (plain JAX) --
    count = jnp.float32(N * HW)
    ch_sum = jnp.sum(part_sum, axis=(0, 1))        # (C, 1)
    ch_sq = jnp.sum(part_sq, axis=(0, 1))          # (C, 1)
    mean = ch_sum / count
    # Clamp to avoid NaN from E[y^2]-E[y]^2 cancellation on near-constant channels.
    var = jnp.maximum(ch_sq / count - mean * mean, 0.0)
    inv_std = lax.rsqrt(var + jnp.float32(eps))
    scale = bn_gamma.reshape(C, 1).astype(jnp.float32) * inv_std   # (C, 1)
    shift = bn_beta.reshape(C, 1).astype(jnp.float32) - mean * scale

    # ---- Pass 2: recompute conv per tile and normalize (fully parallel) ---
    act_spec2 = pl.BlockSpec((1, C, T), lambda n, s: (n, 0, s))
    w_spec2 = pl.BlockSpec((C, C), lambda n, s: (0, 0))
    vec_spec2 = pl.BlockSpec((C, 1), lambda n, s: (0, 0))

    out3 = pl.pallas_call(
        functools.partial(_norm_kernel, small_c=small_c),
        out_shape=jax.ShapeDtypeStruct((N, C, HW), x.dtype),
        grid=(N, S),
        in_specs=[act_spec2, act_spec2, w_spec2, w_spec2, vec_spec2, vec_spec2],
        out_specs=act_spec2,
        compiler_params=pltpu.CompilerParams(
            dimension_semantics=("parallel", "parallel"),
            vmem_limit_bytes=vmem_limit),
        cost_estimate=pl.CostEstimate(
            flops=flops + 2 * N * C * HW, transcendentals=0,
            bytes_accessed=3 * N * C * HW * elem_bytes),
    )(x3, s3, wx, ws, scale, shift)

    return out3.reshape(N, C, H, W)


def _reference(x, skip, conv_w, conv_b, bn_gamma, bn_beta):
    """Plain-JAX reference mirroring the PyTorch forward (training-mode BN),
    including the conv bias (which must cancel)."""
    combined = jnp.concatenate([x, skip], axis=1)  # (N, 2C, H, W)
    y = jnp.einsum("nihw,oi->nohw", combined, conv_w[:, :, 0, 0]) + conv_b[
        None, :, None, None
    ]
    mean = jnp.mean(y, axis=(0, 2, 3), keepdims=True)
    var = jnp.mean((y - mean) ** 2, axis=(0, 2, 3), keepdims=True)
    yhat = (y - mean) / jnp.sqrt(var + BN_EPS)
    return yhat * bn_gamma[None, :, None, None] + bn_beta[None, :, None, None]


if __name__ == "__main__":
    key = jax.random.PRNGKey(0)
    N, C, H, W = 2, 4, 16, 16

    k_x, k_s, k_w, k_b, k_g, k_be = jax.random.split(key, 6)
    x = jax.random.normal(k_x, (N, C, H, W), dtype=jnp.float32)
    skip = jax.random.normal(k_s, (N, C, H, W), dtype=jnp.float32)

    # Shapes from nn.Conv2d(2C, C, 1) / nn.BatchNorm2d(C)
    conv_w = jax.random.normal(k_w, (C, 2 * C, 1, 1), dtype=jnp.float32) * 0.1
    conv_b = jax.random.normal(k_b, (C,), dtype=jnp.float32) * 0.1
    bn_gamma = 1.0 + 0.1 * jax.random.normal(k_g, (C,), dtype=jnp.float32)
    bn_beta = 0.1 * jax.random.normal(k_be, (C,), dtype=jnp.float32)

    out = enhanced_skip_block(x, skip, conv_w, conv_b, bn_gamma, bn_beta)
    out = jax.block_until_ready(out)

    ref = _reference(x, skip, conv_w, conv_b, bn_gamma, bn_beta)
    assert out.shape == (N, C, H, W)
    assert jnp.allclose(out, ref, atol=1e-4, rtol=1e-4), "mismatch vs reference"

    print("KERNEL_OK")
</pallas_src>

<mosaic_0001>
module attributes {stable_mosaic.version = 11 : i64} {
  func.func @_stats_kernel(%arg0: i32, %arg1: i32, %arg2: i32, %arg3: memref<1x4x256xf32, #tpu.memory_space<vmem>>, %arg4: memref<1x4x256xf32, #tpu.memory_space<vmem>>, %arg5: memref<4x4xf32, #tpu.memory_space<vmem>>, %arg6: memref<4x4xf32, #tpu.memory_space<vmem>>, %arg7: memref<1x1x4x1xf32, #tpu.memory_space<vmem>>, %arg8: memref<1x1x4x1xf32, #tpu.memory_space<vmem>>, %arg9: memref<4x128xf32, #tpu.memory_space<vmem>>, %arg10: memref<4x128xf32, #tpu.memory_space<vmem>>) attributes {dimension_semantics = [#tpu.dimension_semantics<parallel>, #tpu.dimension_semantics<parallel>, #tpu.dimension_semantics<arbitrary>], iteration_bounds = array<i64: 2, 1, 1>, scalar_prefetch = 0 : i64, scratch_operands = 2 : i64, tpu.core_type = #tpu.core_type<tc>, window_params = [{transform_indices = @transform_0, window_bounds = array<i64: 1, 4, 256>}, {transform_indices = @transform_1, window_bounds = array<i64: 1, 4, 256>}, {pipeline_mode = #tpu.pipeline_mode<synchronous>, transform_indices = @transform_2, window_bounds = array<i64: 4, 4>}, {pipeline_mode = #tpu.pipeline_mode<synchronous>, transform_indices = @transform_3, window_bounds = array<i64: 4, 4>}, {transform_indices = @transform_4, window_bounds = array<i64: 1, 1, 4, 1>}, {transform_indices = @transform_5, window_bounds = array<i64: 1, 1, 4, 1>}]} {
    %c0_i32 = arith.constant 0 : i32
    %0 = arith.cmpi eq, %arg2, %c0_i32 : i32
    %1 = arith.extui %0 : i1 to i32
    %c0_i32_0 = arith.constant 0 : i32
    %2 = arith.cmpi ne, %1, %c0_i32_0 : i32
    scf.if %2 {
      %cst_20 = arith.constant 0.000000e+00 : f32
      %74 = vector.broadcast %cst_20 : f32 to vector<4x128xf32>
      %c0_21 = arith.constant 0 : index
      %c0_22 = arith.constant 0 : index
      %75 = vector.load %arg9[%c0_21, %c0_22] : memref<4x128xf32, #tpu.memory_space<vmem>>, vector<4x128xf32>
      tpu.vector_store %arg9[%c0_21, %c0_22], %74 {strides = array<i32>} : memref<4x128xf32, #tpu.memory_space<vmem>>, vector<4x128xf32>,
      %cst_23 = arith.constant 0.000000e+00 : f32
      %76 = vector.broadcast %cst_23 : f32 to vector<4x128xf32>
      %c0_24 = arith.constant 0 : index
      %c0_25 = arith.constant 0 : index
      %77 = vector.load %arg10[%c0_24, %c0_25] : memref<4x128xf32, #tpu.memory_space<vmem>>, vector<4x128xf32>
      tpu.vector_store %arg10[%c0_24, %c0_25], %76 {strides = array<i32>} : memref<4x128xf32, #tpu.memory_space<vmem>>, vector<4x128xf32>,
    } else {
    }
    %c0 = arith.constant 0 : index
    %c0_1 = arith.constant 0 : index
    %3 = vector.load %arg5[%c0, %c0_1] : memref<4x4xf32, #tpu.memory_space<vmem>>, vector<4x4xf32>
    %c0_2 = arith.constant 0 : index
    %c0_3 = arith.constant 0 : index
    %4 = vector.load %arg6[%c0_2, %c0_3] : memref<4x4xf32, #tpu.memory_space<vmem>>, vector<4x4xf32>
    %c0_4 = arith.constant 0 : index
    %c0_5 = arith.constant 0 : index
    %c0_6 = arith.constant 0 : index
    %5 = vector.load %arg3[%c0_4, %c0_5, %c0_6] : memref<1x4x256xf32, #tpu.memory_space<vmem>>, vector<1x4x256xf32>
    %6 = vector.shape_cast %5 : vector<1x4x256xf32> to vector<4x256xf32>
    %c0_7 = arith.constant 0 : index
    %c0_8 = arith.constant 0 : index
    %c0_9 = arith.constant 0 : index
    %7 = vector.load %arg4[%c0_7, %c0_8, %c0_9] : memref<1x4x256xf32, #tpu.memory_space<vmem>>, vector<1x4x256xf32>
    %8 = vector.shape_cast %7 : vector<1x4x256xf32> to vector<4x256xf32>
    %cst = arith.constant 0.000000e+00 : f32
    %9 = vector.broadcast %cst : f32 to vector<4x256xf32>
    %10 = vector.extract_strided_slice %3 {offsets = [0, 0], sizes = [4, 1], strides = [1, 1]} : vector<4x4xf32> to vector<4x1xf32>
    %11 = vector.extract_strided_slice %6 {offsets = [0, 0], sizes = [1, 256], strides = [1, 1]} : vector<4x256xf32> to vector<1x256xf32>
    %12 = vector.broadcast %10 : vector<4x1xf32> to vector<4x256xf32>
    %13 = vector.broadcast %11 : vector<1x256xf32> to vector<4x256xf32>
    %14 = arith.mulf %12, %13 : vector<4x256xf32>
    %15 = arith.addf %9, %14 : vector<4x256xf32>
    %16 = vector.extract_strided_slice %4 {offsets = [0, 0], sizes = [4, 1], strides = [1, 1]} : vector<4x4xf32> to vector<4x1xf32>
    %17 = vector.extract_strided_slice %8 {offsets = [0, 0], sizes = [1, 256], strides = [1, 1]} : vector<4x256xf32> to vector<1x256xf32>
    %18 = vector.broadcast %16 : vector<4x1xf32> to vector<4x256xf32>
    %19 = vector.broadcast %17 : vector<1x256xf32> to vector<4x256xf32>
    %20 = arith.mulf %18, %19 : vector<4x256xf32>
    %21 = arith.addf %15, %20 : vector<4x256xf32>
    %22 = vector.extract_strided_slice %3 {offsets = [0, 1], sizes = [4, 1], strides = [1, 1]} : vector<4x4xf32> to vector<4x1xf32>
    %23 = vector.extract_strided_slice %6 {offsets = [1, 0], sizes = [1, 256], strides = [1, 1]} : vector<4x256xf32> to vector<1x256xf32>
    %24 = vector.broadcast %22 : vector<4x1xf32> to vector<4x256xf32>
    %25 = vector.broadcast %23 : vector<1x256xf32> to vector<4x256xf32>
    %26 = arith.mulf %24, %25 : vector<4x256xf32>
    %27 = arith.addf %21, %26 : vector<4x256xf32>
    %28 = vector.extract_strided_slice %4 {offsets = [0, 1], sizes = [4, 1], strides = [1, 1]} : vector<4x4xf32> to vector<4x1xf32>
    %29 = vector.extract_strided_slice %8 {offsets = [1, 0], sizes = [1, 256], strides = [1, 1]} : vector<4x256xf32> to vector<1x256xf32>
    %30 = vector.broadcast %28 : vector<4x1xf32> to vector<4x256xf32>
    %31 = vector.broadcast %29 : vector<1x256xf32> to vector<4x256xf32>
    %32 = arith.mulf %30, %31 : vector<4x256xf32>
    %33 = arith.addf %27, %32 : vector<4x256xf32>
    %34 = vector.extract_strided_slice %3 {offsets = [0, 2], sizes = [4, 1], strides = [1, 1]} : vector<4x4xf32> to vector<4x1xf32>
    %35 = vector.extract_strided_slice %6 {offsets = [2, 0], sizes = [1, 256], strides = [1, 1]} : vector<4x256xf32> to vector<1x256xf32>
    %36 = vector.broadcast %34 : vector<4x1xf32> to vector<4x256xf32>
    %37 = vector.broadcast %35 : vector<1x256xf32> to vector<4x256xf32>
    %38 = arith.mulf %36, %37 : vector<4x256xf32>
    %39 = arith.addf %33, %38 : vector<4x256xf32>
    %40 = vector.extract_strided_slice %4 {offsets = [0, 2], sizes = [4, 1], strides = [1, 1]} : vector<4x4xf32> to vector<4x1xf32>
    %41 = vector.extract_strided_slice %8 {offsets = [2, 0], sizes = [1, 256], strides = [1, 1]} : vector<4x256xf32> to vector<1x256xf32>
    %42 = vector.broadcast %40 : vector<4x1xf32> to vector<4x256xf32>
    %43 = vector.broadcast %41 : vector<1x256xf32> to vector<4x256xf32>
    %44 = arith.mulf %42, %43 : vector<4x256xf32>
    %45 = arith.addf %39, %44 : vector<4x256xf32>
    %46 = vector.extract_strided_slice %3 {offsets = [0, 3], sizes = [4, 1], strides = [1, 1]} : vector<4x4xf32> to vector<4x1xf32>
    %47 = vector.extract_strided_slice %6 {offsets = [3, 0], sizes = [1, 256], strides = [1, 1]} : vector<4x256xf32> to vector<1x256xf32>
    %48 = vector.broadcast %46 : vector<4x1xf32> to vector<4x256xf32>
    %49 = vector.broadcast %47 : vector<1x256xf32> to vector<4x256xf32>
    %50 = arith.mulf %48, %49 : vector<4x256xf32>
    %51 = arith.addf %45, %50 : vector<4x256xf32>
    %52 = vector.extract_strided_slice %4 {offsets = [0, 3], sizes = [4, 1], strides = [1, 1]} : vector<4x4xf32> to vector<4x1xf32>
    %53 = vector.extract_strided_slice %8 {offsets = [3, 0], sizes = [1, 256], strides = [1, 1]} : vector<4x256xf32> to vector<1x256xf32>
    %54 = vector.broadcast %52 : vector<4x1xf32> to vector<4x256xf32>
    %55 = vector.broadcast %53 : vector<1x256xf32> to vector<4x256xf32>
    %56 = arith.mulf %54, %55 : vector<4x256xf32>
    %57 = arith.addf %51, %56 : vector<4x256xf32>
    %c0_10 = arith.constant 0 : index
    %c0_11 = arith.constant 0 : index
    %58 = vector.load %arg9[%c0_10, %c0_11] : memref<4x128xf32, #tpu.memory_space<vmem>>, vector<4x128xf32>
    %59 = vector.extract_strided_slice %57 {offsets = [0, 0], sizes = [4, 128], strides = [1, 1]} : vector<4x256xf32> to vector<4x128xf32>
    %60 = vector.extract_strided_slice %57 {offsets = [0, 128], sizes = [4, 128], strides = [1, 1]} : vector<4x256xf32> to vector<4x128xf32>
    %61 = arith.addf %59, %60 : vector<4x128xf32>
    %62 = arith.addf %58, %61 : vector<4x128xf32>
    %c0_12 = arith.constant 0 : index
    %c0_13 = arith.constant 0 : index
    %63 = vector.load %arg9[%c0_12, %c0_13] : memref<4x128xf32, #tpu.memory_space<vmem>>, vector<4x128xf32>
    tpu.vector_store %arg9[%c0_12, %c0_13], %62 {strides = array<i32>} : memref<4x128xf32, #tpu.memory_space<vmem>>, vector<4x128xf32>,
    %c0_14 = arith.constant 0 : index
    %c0_15 = arith.constant 0 : index
    %64 = vector.load %arg10[%c0_14, %c0_15] : memref<4x128xf32, #tpu.memory_space<vmem>>, vector<4x128xf32>
    %65 = arith.mulf %57, %57 : vector<4x256xf32>
    %66 = vector.extract_strided_slice %65 {offsets = [0, 0], sizes = [4, 128], strides = [1, 1]} : vector<4x256xf32> to vector<4x128xf32>
    %67 = vector.extract_strided_slice %65 {offsets = [0, 128], sizes = [4, 128], strides = [1, 1]} : vector<4x256xf32> to vector<4x128xf32>
    %68 = arith.addf %66, %67 : vector<4x128xf32>
    %69 = arith.addf %64, %68 : vector<4x128xf32>
    %c0_16 = arith.constant 0 : index
    %c0_17 = arith.constant 0 : index
    %70 = vector.load %arg10[%c0_16, %c0_17] : memref<4x128xf32, #tpu.memory_space<vmem>>, vector<4x128xf32>
    tpu.vector_store %arg10[%c0_16, %c0_17], %69 {strides = array<i32>} : memref<4x128xf32, #tpu.memory_space<vmem>>, vector<4x128xf32>,
    %c0_i32_18 = arith.constant 0 : i32
    %71 = arith.cmpi eq, %arg2, %c0_i32_18 : i32
    %72 = arith.extui %71 : i1 to i32
    %c0_i32_19 = arith.constant 0 : i32
    %73 = arith.cmpi ne, %72, %c0_i32_19 : i32
    scf.if %73 {
      %c0_20 = arith.constant 0 : index
      %c0_21 = arith.constant 0 : index
      %74 = vector.load %arg9[%c0_20, %c0_21] : memref<4x128xf32, #tpu.memory_space<vmem>>, vector<4x128xf32>
      %cst_22 = arith.constant dense<0.000000e+00> : vector<4xf32>
      %75 = vector.multi_reduction <add>, %74, %cst_22 [1] : vector<4x128xf32> to vector<4xf32>
      %76 = vector.shape_cast %75 : vector<4xf32> to vector<4x1xf32>
      %77 = vector.shape_cast %76 : vector<4x1xf32> to vector<1x1x4x1xf32>
      %c0_23 = arith.constant 0 : index
      %c0_24 = arith.constant 0 : index
      %c0_25 = arith.constant 0 : index
      %c0_26 = arith.constant 0 : index
      %78 = vector.load %arg7[%c0_23, %c0_24, %c0_25, %c0_26] : memref<1x1x4x1xf32, #tpu.memory_space<vmem>>, vector<1x1x4x1xf32>
      tpu.vector_store %arg7[%c0_23, %c0_24, %c0_25, %c0_26], %77 {strides = array<i32>} : memref<1x1x4x1xf32, #tpu.memory_space<vmem>>, vector<1x1x4x1xf32>,
      %c0_27 = arith.constant 0 : index
      %c0_28 = arith.constant 0 : index
      %79 = vector.load %arg10[%c0_27, %c0_28] : memref<4x128xf32, #tpu.memory_space<vmem>>, vector<4x128xf32>
      %cst_29 = arith.constant dense<0.000000e+00> : vector<4xf32>
      %80 = vector.multi_reduction <add>, %79, %cst_29 [1] : vector<4x128xf32> to vector<4xf32>
      %81 = vector.shape_cast %80 : vector<4xf32> to vector<4x1xf32>
      %82 = vector.shape_cast %81 : vector<4x1xf32> to vector<1x1x4x1xf32>
      %c0_30 = arith.constant 0 : index
      %c0_31 = arith.constant 0 : index
      %c0_32 = arith.constant 0 : index
      %c0_33 = arith.constant 0 : index
      %83 = vector.load %arg8[%c0_30, %c0_31, %c0_32, %c0_33] : memref<1x1x4x1xf32, #tpu.memory_space<vmem>>, vector<1x1x4x1xf32>
      tpu.vector_store %arg8[%c0_30, %c0_31, %c0_32, %c0_33], %82 {strides = array<i32>} : memref<1x1x4x1xf32, #tpu.memory_space<vmem>>, vector<1x1x4x1xf32>,
    } else {
    }
    return
  }
  func.func @transform_0(%arg0: i32, %arg1: i32, %arg2: i32) -> (i32, i32, i32) {
    %c1_i32 = arith.constant 1 : i32
    %0 = arith.muli %arg1, %c1_i32 : i32
    %1 = arith.addi %0, %arg2 : i32
    %c0_i32 = arith.constant 0 : i32
    %c0_i32_0 = arith.constant 0 : i32
    return %arg0, %c0_i32, %1 : i32, i32, i32
  }
  func.func @transform_1(%arg0: i32, %arg1: i32, %arg2: i32) -> (i32, i32, i32) {
    %c1_i32 = arith.constant 1 : i32
    %0 = arith.muli %arg1, %c1_i32 : i32
    %1 = arith.addi %0, %arg2 : i32
    %c0_i32 = arith.constant 0 : i32
    %c0_i32_0 = arith.constant 0 : i32
    return %arg0, %c0_i32, %1 : i32, i32, i32
  }
  func.func @transform_2(%arg0: i32, %arg1: i32, %arg2: i32) -> (i32, i32) {
    %c0_i32 = arith.constant 0 : i32
    %c0_i32_0 = arith.constant 0 : i32
    %c0_i32_1 = arith.constant 0 : i32
    return %c0_i32, %c0_i32_0 : i32, i32
  }
  func.func @transform_3(%arg0: i32, %arg1: i32, %arg2: i32) -> (i32, i32) {
    %c0_i32 = arith.constant 0 : i32
    %c0_i32_0 = arith.constant 0 : i32
    %c0_i32_1 = arith.constant 0 : i32
    return %c0_i32, %c0_i32_0 : i32, i32
  }
  func.func @transform_4(%arg0: i32, %arg1: i32, %arg2: i32) -> (i32, i32, i32, i32) {
    %c0_i32 = arith.constant 0 : i32
    %c0_i32_0 = arith.constant 0 : i32
    %c0_i32_1 = arith.constant 0 : i32
    return %arg0, %arg1, %c0_i32, %c0_i32_0 : i32, i32, i32, i32
  }
  func.func @transform_5(%arg0: i32, %arg1: i32, %arg2: i32) -> (i32, i32, i32, i32) {
    %c0_i32 = arith.constant 0 : i32
    %c0_i32_0 = arith.constant 0 : i32
    %c0_i32_1 = arith.constant 0 : i32
    return %arg0, %arg1, %c0_i32, %c0_i32_0 : i32, i32, i32, i32
  }
}

</mosaic_0001>

<llo_original>
// kernel: tpu_custom_call.1
$region0: #{tpu_custom_call.1}
  #allocation0 [shape = 'u32[]', space=smem, size = 0x4, offset = 0x4, fixed_abs, tag = 'smem constant byte address 0x4 - core index']
  #allocation1 [shape = 'u32[144,128]{1,0:T(1,128)}', space=vmem, size = 0x12000, scoped, tag = 'internal scratch']
  #allocation2 [shape = 'f32[4,128]{1,0:T(4,128)}', space=vmem, size = 0x800, scoped, tag = 'scratch operand']
  #allocation3 [shape = 'f32[4,128]{1,0:T(4,128)}', space=vmem, size = 0x800, scoped, tag = 'scratch operand']
  %s0 = inlined_call_operand.hbm [shape: f32[2,4,256], index: 0, kind: input, shape index: {}]
  %s1 = inlined_call_operand.hbm [shape: f32[2,4,256], index: 1, kind: input, shape index: {}]
  %s2 = inlined_call_operand.hbm [shape: f32[4,4], index: 2, kind: input, shape index: {}]
  %s3 = inlined_call_operand.vmem [shape: f32[4,4], index: 3, kind: input, shape index: {}]
  %s4 = inlined_call_operand.vmem [shape: f32[2,1,4,1], index: 4, kind: output, shape index: {0}]
  %s5 = inlined_call_operand.vmem [shape: f32[2,1,4,1], index: 5, kind: output, shape index: {1}]
  %6 = xla_tuple %s4, %s5
  %s7 = sld [smem:[#allocation0]]
  $region77: #{tpu_custom_call.1} parent=0
    _
  %s9 = ssub.s32 1, %s7
  %s10 = scalar_select 0, %s9, %s7
  $region1: #{tpu_custom_call.1} parent=0
    #allocation4 [shape = 'u8[8192]{0}', space=vmem, size = 0x2000, scoped, tag = 'input window, operand 0']
    #allocation5 [shape = 's32[2]{0}', space=sflag, size = 0x8, scoped, tag = 'scoped memory for tpu_custom_call.1']
    #allocation6 [shape = 'u8[8192]{0}', space=vmem, size = 0x2000, scoped, tag = 'input window, operand 1']
    #allocation7 [shape = 's32[2]{0}', space=sflag, size = 0x8, scoped, tag = 'scoped memory for tpu_custom_call.1']
    #allocation8 [shape = 'u8[2048]{0}', space=vmem, size = 0x800, scoped, tag = 'input window, operand 2, single buffered']
    %11 = vsyncpa [#allocation5], 0
    %s12 = scalar_lea.sflag [#allocation5], 1
    %13 = vsyncpa %s12, 0
    %14 = vsyncpa [#allocation7], 0
    %s15 = scalar_lea.sflag [#allocation7], 1
    %16 = vsyncpa %s15, 0
    loop: start=0, step=1, limit=4
    $region2: #{tpu_custom_call.1} parent=1 // loop_pre_header
      _
    $region3: #{tpu_custom_call.1} parent=1 // loop_header
      %s18 = sphi 0, %s22
      %p19 = scmp.ge.s32.totalorder %s18, 4
      %s25 = sphi 0, %s44
      %s26 = sphi 0, %s40
      %s27 = sphi 0, %s36
      %s28 = sphi 0, %s25
      %s29 = sphi 0, %s26
      %s30 = sphi 0, %s27
      %s31 = sphi 0, %s28
      %s32 = sphi 0, %s29
      %s33 = sphi 0, %s30
      %s51 = sphi 0, %s53
      %s54 = sphi 0, %s51
      %s55 = sphi 0, %s54
      %s71 = sphi 0, %s55
      %s81 = sphi 0, %s83
      %s84 = sphi 0, %s81
      %s85 = sphi 0, %s84
      %s101 = sphi 0, %s85
      %s105 = sphi 0, %s105
      %s107 = sphi 0, %s105
      %s108 = sphi 0, %s107
      %s122 = sphi 0, %s108
      %s126 = sphi 0, %s126
      %s128 = sphi 0, %s126
      %s129 = sphi 0, %s128
      %s143 = sphi 0, %s129
      %s151 = sphi 0, %s153
      %s154 = sphi 0, %s151
      %s155 = sphi 0, %s154
      %s171 = sphi 0, %s155
      %s179 = sphi 0, %s181
      %s182 = sphi 0, %s179
      %s183 = sphi 0, %s182
      %s199 = sphi 0, %s183
    $region4: #{tpu_custom_call.1} parent=1 // loop_header_branch
      %21 = sbr.rel (%p19) target = $region8
    $region5: #{tpu_custom_call.1} parent=1 // loop_body
      %s23 = ssub.s32 %s18, 1
      %s24 = ssub.s32 %s18, 2
      %s34 = sadd.s32 1, %s27
      %p35 = scmp.ge.s32.totalorder %s34, 1
      %s36 = scalar_select %p35, 0, %s34
      %s37 = sadd.s32 1, %s26
      %s38 = scalar_select %p35, %s37, %s26
      %p39 = scmp.ge.s32.totalorder %s38, 1
      %s40 = scalar_select %p39, 0, %s38
      %s41 = sadd.s32 1, %s25
      %s42 = scalar_select %p39, %s41, %s25
      %p43 = scmp.ge.s32.totalorder %s42, 2
      %s44 = scalar_select %p43, 0, %s42
      %s45 = sadd.s32 %s26, %s27
      %s46 = sadd.s32 %s40, %s36
      %s47 = ssub.s32 %s25, %s44
      %s48 = ssub.s32 %s45, %s46
      %s49 = sor.u32 %s47, %s48
      %p50 = scmp.eq.s32.totalorder %s49, 0
      %s52 = sadd.s32 %s51, 1
      %s53 = scalar_select %p50, %s51, %s52
      %p56 = pneg %p50
      %p57 = scmp.eq.s32.totalorder %s18, 1
      %p58 = por %p56, %p57
      %p59 = scmp.ne.s32.totalorder %s51, %s54
      %p60 = scmp.eq.s32.totalorder %s18, 0
      %p61 = por %p59, %p60
      %p62 = scmp.ne.s32.totalorder %s51, %s54
      %p63 = scmp.eq.s32.totalorder %s23, 1
      %p64 = por %p62, %p63
      %p65 = scmp.ne.s32.totalorder %s54, %s55
      %p66 = scmp.eq.s32.totalorder %s23, 0
      %p67 = por %p65, %p66
      %p68 = scmp.ne.s32.totalorder %s54, %s55
      %p69 = scmp.eq.s32.totalorder %s24, 1
      %p70 = por %p68, %p69
      %p72 = scmp.ne.s32.totalorder %s55, %s71
      %p73 = scmp.eq.s32.totalorder %s24, 0
      %p74 = por %p72, %p73
      %s75 = sadd.s32 %s26, %s27
      %s76 = sadd.s32 %s40, %s36
      %s77 = ssub.s32 %s25, %s44
      %s78 = ssub.s32 %s75, %s76
      %s79 = sor.u32 %s77, %s78
      %p80 = scmp.eq.s32.totalorder %s79, 0
      %s82 = sadd.s32 %s81, 1
      %s83 = scalar_select %p80, %s81, %s82
      %p86 = pneg %p80
      %p87 = scmp.eq.s32.totalorder %s18, 1
      %p88 = por %p86, %p87
      %p89 = scmp.ne.s32.totalorder %s81, %s84
      %p90 = scmp.eq.s32.totalorder %s18, 0
      %p91 = por %p89, %p90
      %p92 = scmp.ne.s32.totalorder %s81, %s84
      %p93 = scmp.eq.s32.totalorder %s23, 1
      %p94 = por %p92, %p93
      %p95 = scmp.ne.s32.totalorder %s84, %s85
      %p96 = scmp.eq.s32.totalorder %s23, 0
      %p97 = por %p95, %p96
      %p98 = scmp.ne.s32.totalorder %s84, %s85
      %p99 = scmp.eq.s32.totalorder %s24, 1
      %p100 = por %p98, %p99
      %p102 = scmp.ne.s32.totalorder %s85, %s101
      %p103 = scmp.eq.s32.totalorder %s24, 0
      %p104 = por %p102, %p103
      %s106 = sadd.s32 %s105, 1
      %p109 = scmp.eq.s32.totalorder %s18, 1
      %p110 = scmp.ne.s32.totalorder %s105, %s107
      %p111 = scmp.eq.s32.totalorder %s18, 0
      %p112 = por %p110, %p111
      %p113 = scmp.ne.s32.totalorder %s105, %s107
      %p114 = scmp.eq.s32.totalorder %s23, 1
      %p115 = por %p113, %p114
      %p116 = scmp.ne.s32.totalorder %s107, %s108
      %p117 = scmp.eq.s32.totalorder %s23, 0
      %p118 = por %p116, %p117
      %p119 = scmp.ne.s32.totalorder %s107, %s108
      %p120 = scmp.eq.s32.totalorder %s24, 1
      %p121 = por %p119, %p120
      %p123 = scmp.ne.s32.totalorder %s108, %s122
      %p124 = scmp.eq.s32.totalorder %s24, 0
      %p125 = por %p123, %p124
      %s127 = sadd.s32 %s126, 1
      %p130 = scmp.eq.s32.totalorder %s18, 1
      %p131 = scmp.ne.s32.totalorder %s126, %s128
      %p132 = scmp.eq.s32.totalorder %s18, 0
      %p133 = por %p131, %p132
      %p134 = scmp.ne.s32.totalorder %s126, %s128
      %p135 = scmp.eq.s32.totalorder %s23, 1
      %p136 = por %p134, %p135
      %p137 = scmp.ne.s32.totalorder %s128, %s129
      %p138 = scmp.eq.s32.totalorder %s23, 0
      %p139 = por %p137, %p138
      %p140 = scmp.ne.s32.totalorder %s128, %s129
      %p141 = scmp.eq.s32.totalorder %s24, 1
      %p142 = por %p140, %p141
      %p144 = scmp.ne.s32.totalorder %s129, %s143
      %p145 = scmp.eq.s32.totalorder %s24, 0
      %p146 = por %p144, %p145
      %s147 = ssub.s32 %s25, %s44
      %s148 = ssub.s32 %s26, %s40
      %s149 = sor.u32 %s147, %s148
      %p150 = scmp.eq.s32.totalorder %s149, 0
      %s152 = sadd.s32 %s151, 1
      %s153 = scalar_select %p150, %s151, %s152
      %p156 = pneg %p150
      %p157 = scmp.eq.s32.totalorder %s18, 1
      %p158 = por %p156, %p157
      %p159 = scmp.ne.s32.totalorder %s151, %s154
      %p160 = scmp.eq.s32.totalorder %s18, 0
      %p161 = por %p159, %p160
      %p162 = scmp.ne.s32.totalorder %s151, %s154
      %p163 = scmp.eq.s32.totalorder %s23, 1
      %p164 = por %p162, %p163
      %p165 = scmp.ne.s32.totalorder %s154, %s155
      %p166 = scmp.eq.s32.totalorder %s23, 0
      %p167 = por %p165, %p166
      %p168 = scmp.ne.s32.totalorder %s154, %s155
      %p169 = scmp.eq.s32.totalorder %s24, 1
      %p170 = por %p168, %p169
      %p172 = scmp.ne.s32.totalorder %s155, %s171
      %p173 = scmp.eq.s32.totalorder %s24, 0
      %p174 = por %p172, %p173
      %s175 = ssub.s32 %s25, %s44
      %s176 = ssub.s32 %s26, %s40
      %s177 = sor.u32 %s175, %s176
      %p178 = scmp.eq.s32.totalorder %s177, 0
      %s180 = sadd.s32 %s179, 1
      %s181 = scalar_select %p178, %s179, %s180
      %p184 = pneg %p178
      %p185 = scmp.eq.s32.totalorder %s18, 1
      %p186 = por %p184, %p185
      %p187 = scmp.ne.s32.totalorder %s179, %s182
      %p188 = scmp.eq.s32.totalorder %s18, 0
      %p189 = por %p187, %p188
      %p190 = scmp.ne.s32.totalorder %s179, %s182
      %p191 = scmp.eq.s32.totalorder %s23, 1
      %p192 = por %p190, %p191
      %p193 = scmp.ne.s32.totalorder %s182, %s183
      %p194 = scmp.eq.s32.totalorder %s23, 0
      %p195 = por %p193, %p194
      %p196 = scmp.ne.s32.totalorder %s182, %s183
      %p197 = scmp.eq.s32.totalorder %s24, 1
      %p198 = por %p196, %p197
      %p200 = scmp.ne.s32.totalorder %s183, %s199
      %p201 = scmp.eq.s32.totalorder %s24, 0
      %p202 = por %p200, %p201
      %p203 = scmp.le.s32.totalorder 1, %s18
      %p204 = scmp.lt.s32.totalorder %s18, 3
      %p205 = pnand %p203, %p204
      %p206 = pneg %p205
      // Predicated region
      $region9: #{tpu_custom_call.1} parent=5 // pred_check
        _
      $region10: #{tpu_custom_call.1} parent=5 // pred_check_branch
        %208 = sbr.rel (%p205) target = $region12
      $region11: #{tpu_custom_call.1} parent=5 // pred_region
        %s209 = ssub.s32 %s18, 1
        // Predicated region
        $region13: #{tpu_custom_call.1} parent=11 // pred_check
          %p210 = pneg %p118
        $region14: #{tpu_custom_call.1} parent=11 // pred_check_branch
          %212 = sbr.rel (%p210) target = $region16
        $region15: #{tpu_custom_call.1} parent=11 // pred_region
          %s214 = ssub.s32 64, 64
          %215 = vsyncadd [#allocation7], %s214
          %s217 = sshll.u32 [#allocation8], 4
          %s218 = int_to_ptr.vmem [resolvable:$true] %s217
          %220 = dma.hbm_to_vmem [thread:$0]  %s2, 64, %s218, [#allocation7]
        $region16: #{tpu_custom_call.1} parent=11 // pred_fallthru
          _
        // Predicated region
        $region17: #{tpu_custom_call.1} parent=11 // pred_check
          %p221 = pneg %p139
        $region18: #{tpu_custom_call.1} parent=11 // pred_check_branch
          %223 = sbr.rel (%p221) target = $region20
        $region19: #{tpu_custom_call.1} parent=11 // pred_region
          _
        $region20: #{tpu_custom_call.1} parent=11 // pred_fallthru
          _
      $region12: #{tpu_custom_call.1} parent=5 // pred_fallthru
        _
      %p224 = scmp.lt.s32.totalorder %s18, 2
      // Predicated region
      $region21: #{tpu_custom_call.1} parent=5 // pred_check
        %p225 = pneg %p224
      $region22: #{tpu_custom_call.1} parent=5 // pred_check_branch
        %227 = sbr.rel (%p225) target = $region24
      $region23: #{tpu_custom_call.1} parent=5 // pred_region
        // Predicated region
        $region25: #{tpu_custom_call.1} parent=23 // pred_check
          %p228 = pneg %p61
        $region26: #{tpu_custom_call.1} parent=23 // pred_check_branch
          %230 = sbr.rel (%p228) target = $region28
        $region27: #{tpu_custom_call.1} parent=23 // pred_region
          %s231 = sand.u32 %s51, 1
          %s232 = scalar_lea.sflag [#allocation5], %s231
          %s233 = sand.u32 %s51, 1
          %s234 = smul.addr %s233, 8
          %s235 = scalar_lea.vmem [#allocation4], %s234
          %s236 = sadd.s32 %s26, %s27
          %s237 = smul.u32 2, %s236
          %s239 = ssub.s32 128, 128
          %240 = vsyncadd %s232, %s239
          %s241 = smul.addr %s25, 2
          %s242 = sadd.s32 %s237, %s241
          %s243 = smul.addr %s242, 64
          %s244 = scalar_lea.hbm %s0, %s243
          %s246 = sshll.u32 %s235, 4
          %s247 = int_to_ptr.vmem [resolvable:$true] %s246
          %249 = dma.hbm_to_vmem [thread:$0]  %s244, 128, %s247, %s232
        $region28: #{tpu_custom_call.1} parent=23 // pred_fallthru
          _
        // Predicated region
        $region29: #{tpu_custom_call.1} parent=23 // pred_check
          %p250 = pneg %p91
        $region30: #{tpu_custom_call.1} parent=23 // pred_check_branch
          %252 = sbr.rel (%p250) target = $region32
        $region31: #{tpu_custom_call.1} parent=23 // pred_region
          %s253 = sand.u32 %s18, 1
          %s254 = scalar_lea.sflag [#allocation7], %s253
          %s255 = sand.u32 %s81, 1
          %s256 = smul.addr %s255, 8
          %s257 = scalar_lea.vmem [#allocation6], %s256
          %s258 = sadd.s32 %s26, %s27
          %s259 = smul.u32 2, %s258
          %s261 = ssub.s32 128, 128
          %262 = vsyncadd %s254, %s261
          %s263 = smul.addr %s25, 2
          %s264 = sadd.s32 %s259, %s263
          %s265 = smul.addr %s264, 64
          %s266 = scalar_lea.hbm %s1, %s265
          %s268 = sshll.u32 %s257, 4
          %s269 = int_to_ptr.vmem [resolvable:$true] %s268
          %271 = dma.hbm_to_vmem [thread:$0]  %s266, 128, %s269, %s254
        $region32: #{tpu_custom_call.1} parent=23 // pred_fallthru
          _
      $region24: #{tpu_custom_call.1} parent=5 // pred_fallthru
        _
      %p272 = scmp.le.s32.totalorder 1, %s18
      %p273 = scmp.lt.s32.totalorder %s18, 3
      %p274 = pnand %p272, %p273
      %p275 = pneg %p274
      // Predicated region
      $region33: #{tpu_custom_call.1} parent=5 // pred_check
        _
      $region34: #{tpu_custom_call.1} parent=5 // pred_check_branch
        %277 = sbr.rel (%p274) target = $region36
      $region35: #{tpu_custom_call.1} parent=5 // pred_region
        %s278 = ssub.s32 %s18, 1
        %s279 = sand.u32 %s54, 1
        %s280 = scalar_lea.sflag [#allocation5], %s279
        %s281 = sand.u32 %s54, 1
        %s282 = smul.addr %s281, 8
        %s283 = scalar_lea.vmem [#allocation4], %s282
        // Predicated region
        $region37: #{tpu_custom_call.1} parent=35 // pred_check
          %p284 = pneg %p67
        $region38: #{tpu_custom_call.1} parent=35 // pred_check_branch
          %286 = sbr.rel (%p284) target = $region40
        $region39: #{tpu_custom_call.1} parent=35 // pred_region
          %287 = dma.done %s280, 128
        $region40: #{tpu_custom_call.1} parent=35 // pred_fallthru
          _
        %s288 = sand.u32 %s23, 1
        %s289 = scalar_lea.sflag [#allocation7], %s288
        %s290 = sand.u32 %s84, 1
        %s291 = smul.addr %s290, 8
        %s292 = scalar_lea.vmem [#allocation6], %s291
        // Predicated region
        $region41: #{tpu_custom_call.1} parent=35 // pred_check
          %p293 = pneg %p97
        $region42: #{tpu_custom_call.1} parent=35 // pred_check_branch
          %295 = sbr.rel (%p293) target = $region44
        $region43: #{tpu_custom_call.1} parent=35 // pred_region
          %296 = dma.done %s289, 128
        $region44: #{tpu_custom_call.1} parent=35 // pred_fallthru
          _
        // Predicated region
        $region45: #{tpu_custom_call.1} parent=35 // pred_check
          %p297 = pneg %p118
        $region46: #{tpu_custom_call.1} parent=35 // pred_check_branch
          %299 = sbr.rel (%p297) target = $region48
        $region47: #{tpu_custom_call.1} parent=35 // pred_region
          %300 = dma.done [#allocation7], 64
        $region48: #{tpu_custom_call.1} parent=35 // pred_fallthru
          _
        %s301 = sand.u32 %s54, 1
        %s302 = scalar_lea.sflag [#allocation5], %s301
        %s303 = sand.u32 %s54, 1
        %s304 = smul.addr %s303, 8
        %s305 = scalar_lea.vmem [#allocation4], %s304
        %p306 = pneg %p67
        %p307 = pneg %p64
        %s308 = sand.u32 %s23, 1
        %s309 = scalar_lea.sflag [#allocation7], %s308
        %s310 = sand.u32 %s84, 1
        %s311 = smul.addr %s310, 8
        %s312 = scalar_lea.vmem [#allocation6], %s311
        %p313 = pneg %p97
        %p314 = pneg %p94
        %p315 = pneg %p118
        %p316 = pneg %p115
        %p317 = pneg %p139
        %p318 = pneg %p136
        %p319 = pneg %p167
        %p320 = pneg %p164
        %p321 = scmp.lt.s32.totalorder %s28, 1
        %s322 = scalar_select %p321, %s28, 1
        %p323 = scmp.lt.s32.totalorder %s29, 0
        %s324 = scalar_select %p323, %s29, 0
        %s325 = sadd.s32 %s324, %s322
        %s326 = smul.addr %s325, 4
        %s327 = scalar_lea.vmem %s4, %s326
        %p328 = pneg %p195
        %p329 = pneg %p192
        %p330 = scmp.lt.s32.totalorder %s28, 1
        %s331 = scalar_select %p330, %s28, 1
        %p332 = scmp.lt.s32.totalorder %s29, 0
        %s333 = scalar_select %p332, %s29, 0
        %s334 = sadd.s32 %s333, %s331
        %s335 = smul.addr %s334, 4
        %s336 = scalar_lea.vmem %s5, %s335
        %s337 = sadd.s32 %s29, %s30
        %s338 = smul.u32 2, %s337
        %s339 = sadd.s32 %s29, %s30
        %s340 = smul.u32 2, %s339
        %p341 = scmp.lt.s32.totalorder %s28, 1
        %s342 = scalar_select %p341, %s28, 1
        %p343 = scmp.lt.s32.totalorder %s29, 0
        %s344 = scalar_select %p343, %s29, 0
        %s345 = sadd.s32 %s344, %s342
        %s346 = smul.addr %s345, 4
        %s347 = scalar_lea.vmem %s4, %s346
        %p348 = scmp.lt.s32.totalorder %s28, 1
        %s349 = scalar_select %p348, %s28, 1
        %p350 = scmp.lt.s32.totalorder %s29, 0
        %s351 = scalar_select %p350, %s29, 0
        %s352 = sadd.s32 %s351, %s349
        %s353 = smul.addr %s352, 4
        %s354 = scalar_lea.vmem %s5, %s353
        %p355 = scmp.eq.s32.totalorder %s30, 0
        // Predicated region
        $region49: #{tpu_custom_call.1} parent=35 // pred_check
          %p356 = pneg %p355
        $region50: #{tpu_custom_call.1} parent=35 // pred_check_branch
          %358 = sbr.rel (%p356) target = $region52
        $region51: #{tpu_custom_call.1} parent=35 // pred_region
          %359 = vst [vmem:[#allocation2] sm:$0xf] 0.0
          %360 = vst [vmem:[#allocation3] sm:$0xf] 0.0
        $region52: #{tpu_custom_call.1} parent=35 // pred_fallthru
          _
        %v361 = vld [vmem:[#allocation8] sm:$0xf]
        %v362 = vld [vmem:[%s3] sm:$0xf]
        %v363 = vld [vmem:[%s283] sm:$0xff]
        %v364 = vld [vmem:[%s292] sm:$0xff]
        %366 = vset.pattern.permute.xlu0 0
        %367 = vperm.xlu0 %366, %v361
        %v368 = vpop.permute.xlu0 %367
        %v371 = vlaneseq
        %v372 = vshrl.u32 %v371, 7
        %v373 = vsub.s32 0, %v372
        %v374 = vrot.slane %v363, %v373
        %v375 = vlaneseq
        %v376 = vshrl.u32 %v375, 7
        %v377 = vsub.s32 4, %v376
        %v378 = vrot.slane %v363, %v377
        %v381 = vlaneseq
        %v382 = vshrl.u32 %v381, 7
        %v383 = vsub.s32 0, %v382
        %v384 = vrot.slane %v374, %v383
        %v385 = vlaneseq
        %v386 = vshrl.u32 %v385, 7
        %v387 = vsub.s32 0, %v386
        %v388 = vrot.slane %v378, %v387
        %v389 = vmul.f32 %v368, %v384
        %v390 = vmul.f32 %v368, %v388
        %v391 = vadd.f32 %v389, 0.0
        %v392 = vadd.f32 %v390, 0.0
        %394 = vset.pattern.permute.xlu0 0
        %395 = vperm.xlu0 %394, %v362
        %v396 = vpop.permute.xlu0 %395
        %v399 = vlaneseq
        %v400 = vshrl.u32 %v399, 7
        %v401 = vsub.s32 0, %v400
        %v402 = vrot.slane %v364, %v401
        %v403 = vlaneseq
        %v404 = vshrl.u32 %v403, 7
        %v405 = vsub.s32 4, %v404
        %v406 = vrot.slane %v364, %v405
        %v409 = vlaneseq
        %v410 = vshrl.u32 %v409, 7
        %v411 = vsub.s32 0, %v410
        %v412 = vrot.slane %v402, %v411
        %v413 = vlaneseq
        %v414 = vshrl.u32 %v413, 7
        %v415 = vsub.s32 0, %v414
        %v416 = vrot.slane %v406, %v415
        %v417 = vmul.f32 %v396, %v412
        %v418 = vmul.f32 %v396, %v416
        %v419 = vadd.f32 %v391, %v417
        %v420 = vadd.f32 %v392, %v418
        %421 = vset.pattern.permute.xlu0 1
        %422 = vperm.xlu0 %421, %v361
        %v423 = vpop.permute.xlu0 %422
        %v425 = vlaneseq
        %v426 = vshrl.u32 %v425, 7
        %v427 = vsub.s32 1, %v426
        %v428 = vrot.slane %v363, %v427
        %v429 = vlaneseq
        %v430 = vshrl.u32 %v429, 7
        %v431 = vsub.s32 5, %v430
        %v432 = vrot.slane %v363, %v431
        %v435 = vlaneseq
        %v436 = vshrl.u32 %v435, 7
        %v437 = vsub.s32 1, %v436
        %v438 = vrot.slane %v428, %v437
        %v439 = vlaneseq
        %v440 = vshrl.u32 %v439, 7
        %v441 = vsub.s32 1, %v440
        %v442 = vrot.slane %v432, %v441
        %v443 = vmul.f32 %v423, %v438
        %v444 = vmul.f32 %v423, %v442
        %v445 = vadd.f32 %v419, %v443
        %v446 = vadd.f32 %v420, %v444
        %447 = vset.pattern.permute.xlu0 1
        %448 = vperm.xlu0 %447, %v362
        %v449 = vpop.permute.xlu0 %448
        %v451 = vlaneseq
        %v452 = vshrl.u32 %v451, 7
        %v453 = vsub.s32 1, %v452
        %v454 = vrot.slane %v364, %v453
        %v455 = vlaneseq
        %v456 = vshrl.u32 %v455, 7
        %v457 = vsub.s32 5, %v456
        %v458 = vrot.slane %v364, %v457
        %v461 = vlaneseq
        %v462 = vshrl.u32 %v461, 7
        %v463 = vsub.s32 1, %v462
        %v464 = vrot.slane %v454, %v463
        %v465 = vlaneseq
        %v466 = vshrl.u32 %v465, 7
        %v467 = vsub.s32 1, %v466
        %v468 = vrot.slane %v458, %v467
        %v469 = vmul.f32 %v449, %v464
        %v470 = vmul.f32 %v449, %v468
        %v471 = vadd.f32 %v445, %v469
        %v472 = vadd.f32 %v446, %v470
        %473 = vset.pattern.permute.xlu0 2
        %474 = vperm.xlu0 %473, %v361
        %v475 = vpop.permute.xlu0 %474
        %v477 = vlaneseq
        %v478 = vshrl.u32 %v477, 7
        %v479 = vsub.s32 2, %v478
        %v480 = vrot.slane %v363, %v479
        %v481 = vlaneseq
        %v482 = vshrl.u32 %v481, 7
        %v483 = vsub.s32 6, %v482
        %v484 = vrot.slane %v363, %v483
        %v487 = vlaneseq
        %v488 = vshrl.u32 %v487, 7
        %v489 = vsub.s32 2, %v488
        %v490 = vrot.slane %v480, %v489
        %v491 = vlaneseq
        %v492 = vshrl.u32 %v491, 7
        %v493 = vsub.s32 2, %v492
        %v494 = vrot.slane %v484, %v493
        %v495 = vmul.f32 %v475, %v490
        %v496 = vmul.f32 %v475, %v494
        %v497 = vadd.f32 %v471, %v495
        %v498 = vadd.f32 %v472, %v496
        %499 = vset.pattern.permute.xlu0 2
        %500 = vperm.xlu0 %499, %v362
        %v501 = vpop.permute.xlu0 %500
        %v503 = vlaneseq
        %v504 = vshrl.u32 %v503, 7
        %v505 = vsub.s32 2, %v504
        %v506 = vrot.slane %v364, %v505
        %v507 = vlaneseq
        %v508 = vshrl.u32 %v507, 7
        %v509 = vsub.s32 6, %v508
        %v510 = vrot.slane %v364, %v509
        %v513 = vlaneseq
        %v514 = vshrl.u32 %v513, 7
        %v515 = vsub.s32 2, %v514
        %v516 = vrot.slane %v506, %v515
        %v517 = vlaneseq
        %v518 = vshrl.u32 %v517, 7
        %v519 = vsub.s32 2, %v518
        %v520 = vrot.slane %v510, %v519
        %v521 = vmul.f32 %v501, %v516
        %v522 = vmul.f32 %v501, %v520
        %v523 = vadd.f32 %v497, %v521
        %v524 = vadd.f32 %v498, %v522
        %525 = vset.pattern.permute.xlu0 3
        %526 = vperm.xlu0 %525, %v361
        %v527 = vpop.permute.xlu0 %526
        %v529 = vlaneseq
        %v530 = vshrl.u32 %v529, 7
        %v531 = vsub.s32 3, %v530
        %v532 = vrot.slane %v363, %v531
        %v533 = vlaneseq
        %v534 = vshrl.u32 %v533, 7
        %v535 = vsub.s32 7, %v534
        %v536 = vrot.slane %v363, %v535
        %v539 = vlaneseq
        %v540 = vshrl.u32 %v539, 7
        %v541 = vsub.s32 3, %v540
        %v542 = vrot.slane %v532, %v541
        %v543 = vlaneseq
        %v544 = vshrl.u32 %v543, 7
        %v545 = vsub.s32 3, %v544
        %v546 = vrot.slane %v536, %v545
        %v547 = vmul.f32 %v527, %v542
        %v548 = vmul.f32 %v527, %v546
        %v549 = vadd.f32 %v523, %v547
        %v550 = vadd.f32 %v524, %v548
        %551 = vset.pattern.permute.xlu0 3
        %552 = vperm.xlu0 %551, %v362
        %v553 = vpop.permute.xlu0 %552
        %v555 = vlaneseq
        %v556 = vshrl.u32 %v555, 7
        %v557 = vsub.s32 3, %v556
        %v558 = vrot.slane %v364, %v557
        %v559 = vlaneseq
        %v560 = vshrl.u32 %v559, 7
        %v561 = vsub.s32 7, %v560
        %v562 = vrot.slane %v364, %v561
        %v565 = vlaneseq
        %v566 = vshrl.u32 %v565, 7
        %v567 = vsub.s32 3, %v566
        %v568 = vrot.slane %v558, %v567
        %v569 = vlaneseq
        %v570 = vshrl.u32 %v569, 7
        %v571 = vsub.s32 3, %v570
        %v572 = vrot.slane %v562, %v571
        %v573 = vmul.f32 %v553, %v568
        %v574 = vmul.f32 %v553, %v572
        %v575 = vadd.f32 %v549, %v573
        %v576 = vadd.f32 %v550, %v574
        %v577 = vld [vmem:[#allocation2] sm:$0xf]
        %v578 = vadd.f32 %v575, %v576
        %v579 = vadd.f32 %v577, %v578
        %580 = vst [vmem:[#allocation2] sm:$0xf] %v579
        %v581 = vld [vmem:[#allocation3] sm:$0xf]
        %v582 = vmul.f32 %v575, %v575
        %v583 = vmul.f32 %v576, %v576
        %v584 = vadd.f32 %v582, %v583
        %v585 = vadd.f32 %v581, %v584
        %586 = vst [vmem:[#allocation3] sm:$0xf] %v585
        // Predicated region
        $region53: #{tpu_custom_call.1} parent=35 // pred_check
          %p587 = pneg %p355
        $region54: #{tpu_custom_call.1} parent=35 // pred_check_branch
          %589 = sbr.rel (%p587) target = $region56
        $region55: #{tpu_custom_call.1} parent=35 // pred_region
          %v590 = vld [vmem:[#allocation2] sm:$0xf]
          %vm591 = vcmask 1043456
          %v592 = vsel %vm591, %v590, 0.0
          %593 = vadd.xlane.f32.xlu0 %v592
          %v594 = vpop.xlane.xlu0 %593
          %vm595 = vcmask 3072
          %596 = vst.msk [vmem:[%s347] sm:$0xf] %vm595, %v594
          %v597 = vld [vmem:[#allocation3] sm:$0xf]
          %v598 = vsel %vm591, %v597, 0.0
          %599 = vadd.xlane.f32.xlu0 %v598
          %v600 = vpop.xlane.xlu0 %599
          %601 = vst.msk [vmem:[%s354] sm:$0xf] %vm595, %v600
        $region56: #{tpu_custom_call.1} parent=35 // pred_fallthru
          _
        %p602 = scmp.lt.s32.totalorder %s28, 1
        %s603 = scalar_select %p602, %s28, 1
        %p604 = scmp.lt.s32.totalorder %s29, 0
        %s605 = scalar_select %p604, %s29, 0
        %s606 = sadd.s32 %s605, %s603
        %s607 = smul.addr %s606, 4
        %s608 = scalar_lea.vmem %s4, %s607
        %p609 = scmp.lt.s32.totalorder %s28, 1
        %s610 = scalar_select %p609, %s28, 1
        %p611 = scmp.lt.s32.totalorder %s29, 0
        %s612 = scalar_select %p611, %s29, 0
        %s613 = sadd.s32 %s612, %s610
        %s614 = smul.addr %s613, 4
        %s615 = scalar_lea.vmem %s5, %s614
        // Predicated region
        $region57: #{tpu_custom_call.1} parent=35 // pred_check
          %p616 = pneg %p164
        $region58: #{tpu_custom_call.1} parent=35 // pred_check_branch
          %618 = sbr.rel (%p616) target = $region60
        $region59: #{tpu_custom_call.1} parent=35 // pred_region
          _
        $region60: #{tpu_custom_call.1} parent=35 // pred_fallthru
          _
        // Predicated region
        $region61: #{tpu_custom_call.1} parent=35 // pred_check
          %p619 = pneg %p192
        $region62: #{tpu_custom_call.1} parent=35 // pred_check_branch
          %621 = sbr.rel (%p619) target = $region64
        $region63: #{tpu_custom_call.1} parent=35 // pred_region
          _
        $region64: #{tpu_custom_call.1} parent=35 // pred_fallthru
          _
      $region36: #{tpu_custom_call.1} parent=5 // pred_fallthru
        _
      %p622 = scmp.le.s32.totalorder 2, %s18
      // Predicated region
      $region65: #{tpu_custom_call.1} parent=5 // pred_check
        %p623 = pneg %p622
      $region66: #{tpu_custom_call.1} parent=5 // pred_check_branch
        %625 = sbr.rel (%p623) target = $region68
      $region67: #{tpu_custom_call.1} parent=5 // pred_region
        %s626 = ssub.s32 %s18, 2
        // Predicated region
        $region69: #{tpu_custom_call.1} parent=67 // pred_check
          %p627 = pneg %p170
        $region70: #{tpu_custom_call.1} parent=67 // pred_check_branch
          %629 = sbr.rel (%p627) target = $region72
        $region71: #{tpu_custom_call.1} parent=67 // pred_region
          %p630 = scmp.lt.s32.totalorder %s31, 1
          %s631 = scalar_select %p630, %s31, 1
          %p632 = scmp.lt.s32.totalorder %s32, 0
          %s633 = scalar_select %p632, %s32, 0
          %s634 = sadd.s32 %s633, %s631
          %s635 = smul.addr %s634, 4
          %s636 = scalar_lea.vmem %s4, %s635
        $region72: #{tpu_custom_call.1} parent=67 // pred_fallthru
          _
        // Predicated region
        $region73: #{tpu_custom_call.1} parent=67 // pred_check
          %p637 = pneg %p198
        $region74: #{tpu_custom_call.1} parent=67 // pred_check_branch
          %639 = sbr.rel (%p637) target = $region76
        $region75: #{tpu_custom_call.1} parent=67 // pred_region
          %p640 = scmp.lt.s32.totalorder %s31, 1
          %s641 = scalar_select %p640, %s31, 1
          %p642 = scmp.lt.s32.totalorder %s32, 0
          %s643 = scalar_select %p642, %s32, 0
          %s644 = sadd.s32 %s643, %s641
          %s645 = smul.addr %s644, 4
          %s646 = scalar_lea.vmem %s5, %s645
        $region76: #{tpu_custom_call.1} parent=67 // pred_fallthru
          _
      $region68: #{tpu_custom_call.1} parent=5 // pred_fallthru
        _
    $region6: #{tpu_custom_call.1} parent=1 // loop_footer
      %s22 = sadd.s32 1, %s18
    $region7: #{tpu_custom_call.1} parent=1 // loop_footer_branch
      %17 = sbr.rel target = $region3
    $region8: #{tpu_custom_call.1} parent=1 // loop_exit
      _
    %647 = vsyncpa [#allocation5], 1
    %s648 = scalar_lea.sflag [#allocation5], 1
    %649 = vsyncpa %s648, 1
    %650 = vsyncpa [#allocation7], 1
    %s651 = scalar_lea.sflag [#allocation7], 1
    %652 = vsyncpa %s651, 1

</llo_original>
